<compile_context>
chip_gen: v7x
topology: tpu7x:2x2x1
jax: 0.10.0
libtpu: 0.0.40
codegen_flags: <defaults>
</compile_context>

<pallas_src>
import functools

import jax
import jax.numpy as jnp
from jax.experimental import pallas as pl
from jax.experimental.pallas import tpu as pltpu


def _round_up(x, m):
    return (x + m - 1) // m * m


def _temporal_block_kernel(x_ref, w1_ref, b1_ref, w2_ref, b2_ref,
                           wd_ref, bd_ref, o_ref, h1p_ref,
                           *, TB, LT, E, PADT, K, DIL, C_in, C_out):
    # x_ref: (TB, PADT + LT, C_in) bf16, already left-padded with PADT zero
    # rows in the wrapper. Tap k of the causal dilated conv reads rows
    # [E + k*DIL, E + k*DIL + LT)  where E = PADT - (K-1)*DIL.

    # ---- conv1 (dilated, causal) + chomp1 + relu1 ------------------------
    acc1 = jnp.zeros((TB * LT, C_out), jnp.float32)
    for k in range(K):
        off = E + k * DIL
        xs = x_ref[:, off:off + LT, :].reshape(TB * LT, C_in)
        acc1 = acc1 + jnp.dot(xs, w1_ref[k], preferred_element_type=jnp.float32)
    h1 = jnp.maximum(acc1 + b1_ref[...], 0.0)
    # dropout1: identity (eval mode)

    # ---- stage h1 into the padded scratch; zero only the PADT pad rows ---
    if PADT:
        h1p_ref[:, 0:PADT, :] = jnp.zeros((TB, PADT, C_out), h1p_ref.dtype)
    h1p_ref[:, PADT:PADT + LT, :] = h1.astype(h1p_ref.dtype).reshape(TB, LT, C_out)

    # ---- conv2 (dilated, causal) + chomp2 + relu2 ------------------------
    acc2 = jnp.zeros((TB * LT, C_out), jnp.float32)
    for k in range(K):
        off = E + k * DIL
        hs = h1p_ref[:, off:off + LT, :].reshape(TB * LT, C_out)
        acc2 = acc2 + jnp.dot(hs, w2_ref[k], preferred_element_type=jnp.float32)
    h2 = jnp.maximum(acc2 + b2_ref[...], 0.0)
    # dropout2: identity (eval mode)

    # ---- residual 1x1 downsample conv + final relu -----------------------
    xr = x_ref[:, PADT:PADT + LT, :].reshape(TB * LT, C_in)
    res = jnp.dot(xr, wd_ref[...], preferred_element_type=jnp.float32) + bd_ref[...]
    out = jnp.maximum(h2 + res, 0.0)
    o_ref[...] = out.reshape(TB, LT, C_out).astype(o_ref.dtype)


def temporal_block(x_ncl, w1, b1, w2, b2, wd, bd, *, kernel_size, dilation,
                   batch_tile=None, compute_dtype=jnp.bfloat16):
    """x_ncl: (B, C_in, L) as in PyTorch. Weights in PyTorch conv1d layout:
       w1: (C_out, C_in, K), w2: (C_out, C_out, K), wd: (C_out, C_in, 1)."""
    B, C_in, L = x_ncl.shape
    C_out = w1.shape[0]
    K, DIL = kernel_size, dilation
    PAD = (K - 1) * DIL

    # Sublane-aligned causal pad, lane-dense (128-padded) channels, time
    # rounded up to a multiple of 8 (trailing zeros are causal-safe).
    PADT = _round_up(PAD, 8)
    E = PADT - PAD
    LT = _round_up(L, 8)
    Cin_p = _round_up(C_in, 128)
    Cout_p = _round_up(C_out, 128)

    if batch_tile is None:
        # Amortize per-grid-step overhead but keep >=2 grid steps so the
        # "parallel" batch axis can shard across v7x's two TensorCores.
        batch_tile = max(1, min(8, B // 2)) if B > 1 else 1
    TB = batch_tile
    Bp = _round_up(B, TB)
    LP = LT + PADT

    # Pre-pad once in HBM: channels-last, bf16, PADT leading zero rows.
    x_blc = jnp.transpose(x_ncl, (0, 2, 1)).astype(compute_dtype)
    x_pad = jnp.pad(x_blc, ((0, Bp - B), (PADT, LT - L), (0, Cin_p - C_in)))

    # Weights as (K, Cin, Cout) taps, zero-padded to lane-dense channels.
    w1_k = jnp.pad(jnp.transpose(w1, (2, 1, 0)).astype(compute_dtype),
                   ((0, 0), (0, Cin_p - C_in), (0, Cout_p - C_out)))
    w2_k = jnp.pad(jnp.transpose(w2, (2, 1, 0)).astype(compute_dtype),
                   ((0, 0), (0, Cout_p - C_out), (0, Cout_p - C_out)))
    wd_k = jnp.pad(jnp.transpose(wd[:, :, 0], (1, 0)).astype(compute_dtype),
                   ((0, Cin_p - C_in), (0, Cout_p - C_out)))
    b1_k = jnp.pad(b1.astype(jnp.float32), (0, Cout_p - C_out)).reshape(1, Cout_p)
    b2_k = jnp.pad(b2.astype(jnp.float32), (0, Cout_p - C_out)).reshape(1, Cout_p)
    bd_k = jnp.pad(bd.astype(jnp.float32), (0, Cout_p - C_out)).reshape(1, Cout_p)

    kernel = functools.partial(
        _temporal_block_kernel, TB=TB, LT=LT, E=E, PADT=PADT,
        K=K, DIL=DIL, C_in=Cin_p, C_out=Cout_p)

    # VMEM budget: double-buffered I/O blocks + resident weights + scratch.
    itemsize = jnp.dtype(compute_dtype).itemsize
    vmem_est = (2 * TB * LP * Cin_p * itemsize           # x block (x2 buffers)
                + 2 * TB * LT * Cout_p * 4               # out block (x2 buffers)
                + 2 * (K * Cin_p * Cout_p + K * Cout_p * Cout_p
                       + Cin_p * Cout_p) * itemsize      # weights
                + 2 * 3 * Cout_p * 4                     # biases
                + TB * LP * Cout_p * itemsize)           # h1 scratch
    vmem_limit = int(min(64 << 20, max(16 << 20, 2 * vmem_est)))  # v7x: 64 MiB

    out_pad = pl.pallas_call(
        kernel,
        out_shape=jax.ShapeDtypeStruct((Bp, LT, Cout_p), jnp.float32),
        grid_spec=pltpu.PrefetchScalarGridSpec(
            num_scalar_prefetch=0,
            grid=(Bp // TB,),
            in_specs=[
                pl.BlockSpec((TB, LP, Cin_p), lambda b: (b, 0, 0)),      # x
                pl.BlockSpec((K, Cin_p, Cout_p), lambda b: (0, 0, 0)),   # w1
                pl.BlockSpec((1, Cout_p), lambda b: (0, 0)),             # b1
                pl.BlockSpec((K, Cout_p, Cout_p), lambda b: (0, 0, 0)),  # w2
                pl.BlockSpec((1, Cout_p), lambda b: (0, 0)),             # b2
                pl.BlockSpec((Cin_p, Cout_p), lambda b: (0, 0)),         # wd
                pl.BlockSpec((1, Cout_p), lambda b: (0, 0)),             # bd
            ],
            out_specs=pl.BlockSpec((TB, LT, Cout_p), lambda b: (b, 0, 0)),
            scratch_shapes=[pltpu.VMEM((TB, LP, Cout_p), compute_dtype)],
        ),
        compiler_params=pltpu.CompilerParams(
            dimension_semantics=("parallel",),
            vmem_limit_bytes=vmem_limit),
    )(x_pad, w1_k, b1_k, w2_k, b2_k, wd_k, bd_k)

    # Slice off batch/time/channel padding; return PyTorch NCL layout.
    # TODO(synk): if the downstream consumer accepts channels-last (B, L, C),
    # return out_pad[:B, :L, :C_out] directly and skip this HBM transpose.
    return jnp.transpose(out_pad[:B, :L, :C_out], (0, 2, 1))


# ---------------------------- reference (pure JAX) -----------------------------
def _conv1d_ref(x_ncl, w, b, pad, dil):
    y = jax.lax.conv_general_dilated(
        x_ncl, w, window_strides=(1,), padding=[(pad, pad)],
        rhs_dilation=(dil,), dimension_numbers=('NCH', 'OIH', 'NCH'))
    return y + b[None, :, None]


def temporal_block_ref(x, w1, b1, w2, b2, wd, bd, *, kernel_size, dilation,
                       compute_dtype=jnp.float32):
    """Reference. With compute_dtype=bfloat16 it applies the same input/weight
    quantization points as the kernel (matmul inputs bf16, f32 accumulation)."""
    q = lambda a: a.astype(compute_dtype).astype(jnp.float32)
    L = x.shape[-1]
    pad = (kernel_size - 1) * dilation
    h = _conv1d_ref(q(x), q(w1), b1, pad, dilation)[:, :, :L]   # chomp1
    h = jnp.maximum(h, 0.0)                                     # relu1 (+dropout1)
    h = _conv1d_ref(q(h), q(w2), b2, pad, dilation)[:, :, :L]   # chomp2
    h = jnp.maximum(h, 0.0)                                     # relu2 (+dropout2)
    res = _conv1d_ref(q(x), q(wd), bd, 0, 1)                    # 1x1 downsample
    return jnp.maximum(h + res, 0.0)


if __name__ == "__main__":
    # TemporalBlock(n_inputs=4, n_outputs=8, kernel_size=3, stride=1,
    #               dilation=2, padding=(3-1)*2=4)
    B, C_in, C_out, L = 2, 4, 8, 16
    K, DIL = 3, 2

    key = jax.random.PRNGKey(0)
    kx, k1, k2, k3, k4, k5, k6 = jax.random.split(key, 7)

    x = jax.random.normal(kx, (B, C_in, L), jnp.float32)
    w1 = jax.random.normal(k1, (C_out, C_in, K), jnp.float32) * 0.2
    b1 = jax.random.normal(k2, (C_out,), jnp.float32) * 0.1
    w2 = jax.random.normal(k3, (C_out, C_out, K), jnp.float32) * 0.2
    b2 = jax.random.normal(k4, (C_out,), jnp.float32) * 0.1
    wd = jax.random.normal(k5, (C_out, C_in, 1), jnp.float32) * 0.2
    bd = jax.random.normal(k6, (C_out,), jnp.float32) * 0.1

    out = temporal_block(x, w1, b1, w2, b2, wd, bd,
                         kernel_size=K, dilation=DIL)
    out = jax.block_until_ready(out)
    assert out.shape == (B, C_out, L)

    # Tight check: reference with the same bf16 matmul-input quantization.
    ref_bf16 = temporal_block_ref(x, w1, b1, w2, b2, wd, bd,
                                  kernel_size=K, dilation=DIL,
                                  compute_dtype=jnp.bfloat16)
    assert jnp.max(jnp.abs(out - ref_bf16)) < 1e-3

    # Loose check against the full-f32 reference (bf16 rounding only).
    ref_f32 = temporal_block_ref(x, w1, b1, w2, b2, wd, bd,
                                 kernel_size=K, dilation=DIL)
    assert jnp.max(jnp.abs(out - ref_f32)) < 1e-1

    print("KERNEL_OK")
</pallas_src>

<mosaic_0001>
module attributes {stable_mosaic.version = 11 : i64} {
  func.func @_temporal_block_kernel(%arg0: i32, %arg1: memref<1x24x128xbf16, #tpu.memory_space<vmem>>, %arg2: memref<3x128x128xbf16, #tpu.memory_space<vmem>>, %arg3: memref<1x128xf32, #tpu.memory_space<vmem>>, %arg4: memref<3x128x128xbf16, #tpu.memory_space<vmem>>, %arg5: memref<1x128xf32, #tpu.memory_space<vmem>>, %arg6: memref<128x128xbf16, #tpu.memory_space<vmem>>, %arg7: memref<1x128xf32, #tpu.memory_space<vmem>>, %arg8: memref<1x16x128xf32, #tpu.memory_space<vmem>>, %arg9: memref<1x24x128xbf16, #tpu.memory_space<vmem>>) attributes {dimension_semantics = [#tpu.dimension_semantics<parallel>], iteration_bounds = array<i64: 2>, scalar_prefetch = 0 : i64, scratch_operands = 1 : i64, tpu.core_type = #tpu.core_type<tc>, window_params = [{transform_indices = @transform_0, window_bounds = array<i64: 1, 24, 128>}, {pipeline_mode = #tpu.pipeline_mode<synchronous>, transform_indices = @transform_1, window_bounds = array<i64: 3, 128, 128>}, {pipeline_mode = #tpu.pipeline_mode<synchronous>, transform_indices = @transform_2, window_bounds = array<i64: 1, 128>}, {pipeline_mode = #tpu.pipeline_mode<synchronous>, transform_indices = @transform_3, window_bounds = array<i64: 3, 128, 128>}, {pipeline_mode = #tpu.pipeline_mode<synchronous>, transform_indices = @transform_4, window_bounds = array<i64: 1, 128>}, {pipeline_mode = #tpu.pipeline_mode<synchronous>, transform_indices = @transform_5, window_bounds = array<i64: 128, 128>}, {pipeline_mode = #tpu.pipeline_mode<synchronous>, transform_indices = @transform_6, window_bounds = array<i64: 1, 128>}, {transform_indices = @transform_7, window_bounds = array<i64: 1, 16, 128>}]} {
    %cst = arith.constant 0.000000e+00 : f32
    %0 = vector.broadcast %cst : f32 to vector<16x128xf32>
    %c0 = arith.constant 0 : index
    %c4 = arith.constant 4 : index
    %c0_0 = arith.constant 0 : index
    %1 = vector.load %arg1[%c0, %c4, %c0_0] : memref<1x24x128xbf16, #tpu.memory_space<vmem>>, vector<1x16x128xbf16>
    %2 = vector.shape_cast %1 : vector<1x16x128xbf16> to vector<16x128xbf16>
    %c0_1 = arith.constant 0 : index
    %c0_2 = arith.constant 0 : index
    %c0_3 = arith.constant 0 : index
    %3 = vector.load %arg2[%c0_1, %c0_2, %c0_3] : memref<3x128x128xbf16, #tpu.memory_space<vmem>>, vector<1x128x128xbf16>
    %4 = vector.shape_cast %3 : vector<1x128x128xbf16> to vector<128x128xbf16>
    %cst_4 = arith.constant dense<0.000000e+00> : vector<16x128xf32>
    %5 = tpu.matmul %2, %4, %cst_4 {dimension_numbers = #tpu.dot_dimension_numbers<[1], [0], [0], [1], [0, 0, 1, 1], [], []>} : vector<16x128xbf16>, vector<128x128xbf16>, vector<16x128xf32> -> vector<16x128xf32>
    %6 = arith.addf %0, %5 : vector<16x128xf32>
    %c0_5 = arith.constant 0 : index
    %c6 = arith.constant 6 : index
    %c0_6 = arith.constant 0 : index
    %7 = vector.load %arg1[%c0_5, %c6, %c0_6] : memref<1x24x128xbf16, #tpu.memory_space<vmem>>, vector<1x16x128xbf16>
    %8 = vector.shape_cast %7 : vector<1x16x128xbf16> to vector<16x128xbf16>
    %c1 = arith.constant 1 : index
    %c0_7 = arith.constant 0 : index
    %c0_8 = arith.constant 0 : index
    %9 = vector.load %arg2[%c1, %c0_7, %c0_8] : memref<3x128x128xbf16, #tpu.memory_space<vmem>>, vector<1x128x128xbf16>
    %10 = vector.shape_cast %9 : vector<1x128x128xbf16> to vector<128x128xbf16>
    %cst_9 = arith.constant dense<0.000000e+00> : vector<16x128xf32>
    %11 = tpu.matmul %8, %10, %cst_9 {dimension_numbers = #tpu.dot_dimension_numbers<[1], [0], [0], [1], [0, 0, 1, 1], [], []>} : vector<16x128xbf16>, vector<128x128xbf16>, vector<16x128xf32> -> vector<16x128xf32>
    %12 = arith.addf %6, %11 : vector<16x128xf32>
    %c0_10 = arith.constant 0 : index
    %c8 = arith.constant 8 : index
    %c0_11 = arith.constant 0 : index
    %13 = vector.load %arg1[%c0_10, %c8, %c0_11] : memref<1x24x128xbf16, #tpu.memory_space<vmem>>, vector<1x16x128xbf16>
    %14 = vector.shape_cast %13 : vector<1x16x128xbf16> to vector<16x128xbf16>
    %c2 = arith.constant 2 : index
    %c0_12 = arith.constant 0 : index
    %c0_13 = arith.constant 0 : index
    %15 = vector.load %arg2[%c2, %c0_12, %c0_13] : memref<3x128x128xbf16, #tpu.memory_space<vmem>>, vector<1x128x128xbf16>
    %16 = vector.shape_cast %15 : vector<1x128x128xbf16> to vector<128x128xbf16>
    %cst_14 = arith.constant dense<0.000000e+00> : vector<16x128xf32>
    %17 = tpu.matmul %14, %16, %cst_14 {dimension_numbers = #tpu.dot_dimension_numbers<[1], [0], [0], [1], [0, 0, 1, 1], [], []>} : vector<16x128xbf16>, vector<128x128xbf16>, vector<16x128xf32> -> vector<16x128xf32>
    %18 = arith.addf %12, %17 : vector<16x128xf32>
    %c0_15 = arith.constant 0 : index
    %c0_16 = arith.constant 0 : index
    %19 = vector.load %arg3[%c0_15, %c0_16] : memref<1x128xf32, #tpu.memory_space<vmem>>, vector<1x128xf32>
    %20 = vector.broadcast %19 : vector<1x128xf32> to vector<16x128xf32>
    %21 = arith.addf %18, %20 : vector<16x128xf32>
    %cst_17 = arith.constant 0.000000e+00 : f32
    %22 = vector.broadcast %cst_17 : f32 to vector<16x128xf32>
    %23 = arith.maximumf %21, %22 : vector<16x128xf32>
    %cst_18 = arith.constant 0.000000e+00 : bf16
    %24 = vector.broadcast %cst_18 : bf16 to vector<1x8x128xbf16>
    %c0_19 = arith.constant 0 : index
    %c0_20 = arith.constant 0 : index
    %c0_21 = arith.constant 0 : index
    %25 = vector.load %arg9[%c0_19, %c0_20, %c0_21] : memref<1x24x128xbf16, #tpu.memory_space<vmem>>, vector<1x8x128xbf16>
    tpu.vector_store %arg9[%c0_19, %c0_20, %c0_21], %24 {strides = array<i32>} : memref<1x24x128xbf16, #tpu.memory_space<vmem>>, vector<1x8x128xbf16>,
    %26 = arith.truncf %23 : vector<16x128xf32> to vector<16x128xbf16>
    %27 = vector.shape_cast %26 : vector<16x128xbf16> to vector<1x16x128xbf16>
    %c0_22 = arith.constant 0 : index
    %c8_23 = arith.constant 8 : index
    %c0_24 = arith.constant 0 : index
    %28 = vector.load %arg9[%c0_22, %c8_23, %c0_24] : memref<1x24x128xbf16, #tpu.memory_space<vmem>>, vector<1x16x128xbf16>
    tpu.vector_store %arg9[%c0_22, %c8_23, %c0_24], %27 {strides = array<i32>} : memref<1x24x128xbf16, #tpu.memory_space<vmem>>, vector<1x16x128xbf16>,
    %cst_25 = arith.constant 0.000000e+00 : f32
    %29 = vector.broadcast %cst_25 : f32 to vector<16x128xf32>
    %c0_26 = arith.constant 0 : index
    %c4_27 = arith.constant 4 : index
    %c0_28 = arith.constant 0 : index
    %30 = vector.load %arg9[%c0_26, %c4_27, %c0_28] : memref<1x24x128xbf16, #tpu.memory_space<vmem>>, vector<1x16x128xbf16>
    %31 = vector.shape_cast %30 : vector<1x16x128xbf16> to vector<16x128xbf16>
    %c0_29 = arith.constant 0 : index
    %c0_30 = arith.constant 0 : index
    %c0_31 = arith.constant 0 : index
    %32 = vector.load %arg4[%c0_29, %c0_30, %c0_31] : memref<3x128x128xbf16, #tpu.memory_space<vmem>>, vector<1x128x128xbf16>
    %33 = vector.shape_cast %32 : vector<1x128x128xbf16> to vector<128x128xbf16>
    %cst_32 = arith.constant dense<0.000000e+00> : vector<16x128xf32>
    %34 = tpu.matmul %31, %33, %cst_32 {dimension_numbers = #tpu.dot_dimension_numbers<[1], [0], [0], [1], [0, 0, 1, 1], [], []>} : vector<16x128xbf16>, vector<128x128xbf16>, vector<16x128xf32> -> vector<16x128xf32>
    %35 = arith.addf %29, %34 : vector<16x128xf32>
    %c0_33 = arith.constant 0 : index
    %c6_34 = arith.constant 6 : index
    %c0_35 = arith.constant 0 : index
    %36 = vector.load %arg9[%c0_33, %c6_34, %c0_35] : memref<1x24x128xbf16, #tpu.memory_space<vmem>>, vector<1x16x128xbf16>
    %37 = vector.shape_cast %36 : vector<1x16x128xbf16> to vector<16x128xbf16>
    %c1_36 = arith.constant 1 : index
    %c0_37 = arith.constant 0 : index
    %c0_38 = arith.constant 0 : index
    %38 = vector.load %arg4[%c1_36, %c0_37, %c0_38] : memref<3x128x128xbf16, #tpu.memory_space<vmem>>, vector<1x128x128xbf16>
    %39 = vector.shape_cast %38 : vector<1x128x128xbf16> to vector<128x128xbf16>
    %cst_39 = arith.constant dense<0.000000e+00> : vector<16x128xf32>
    %40 = tpu.matmul %37, %39, %cst_39 {dimension_numbers = #tpu.dot_dimension_numbers<[1], [0], [0], [1], [0, 0, 1, 1], [], []>} : vector<16x128xbf16>, vector<128x128xbf16>, vector<16x128xf32> -> vector<16x128xf32>
    %41 = arith.addf %35, %40 : vector<16x128xf32>
    %c0_40 = arith.constant 0 : index
    %c8_41 = arith.constant 8 : index
    %c0_42 = arith.constant 0 : index
    %42 = vector.load %arg9[%c0_40, %c8_41, %c0_42] : memref<1x24x128xbf16, #tpu.memory_space<vmem>>, vector<1x16x128xbf16>
    %43 = vector.shape_cast %42 : vector<1x16x128xbf16> to vector<16x128xbf16>
    %c2_43 = arith.constant 2 : index
    %c0_44 = arith.constant 0 : index
    %c0_45 = arith.constant 0 : index
    %44 = vector.load %arg4[%c2_43, %c0_44, %c0_45] : memref<3x128x128xbf16, #tpu.memory_space<vmem>>, vector<1x128x128xbf16>
    %45 = vector.shape_cast %44 : vector<1x128x128xbf16> to vector<128x128xbf16>
    %cst_46 = arith.constant dense<0.000000e+00> : vector<16x128xf32>
    %46 = tpu.matmul %43, %45, %cst_46 {dimension_numbers = #tpu.dot_dimension_numbers<[1], [0], [0], [1], [0, 0, 1, 1], [], []>} : vector<16x128xbf16>, vector<128x128xbf16>, vector<16x128xf32> -> vector<16x128xf32>
    %47 = arith.addf %41, %46 : vector<16x128xf32>
    %c0_47 = arith.constant 0 : index
    %c0_48 = arith.constant 0 : index
    %48 = vector.load %arg5[%c0_47, %c0_48] : memref<1x128xf32, #tpu.memory_space<vmem>>, vector<1x128xf32>
    %49 = vector.broadcast %48 : vector<1x128xf32> to vector<16x128xf32>
    %50 = arith.addf %47, %49 : vector<16x128xf32>
    %cst_49 = arith.constant 0.000000e+00 : f32
    %51 = vector.broadcast %cst_49 : f32 to vector<16x128xf32>
    %52 = arith.maximumf %50, %51 : vector<16x128xf32>
    %c0_50 = arith.constant 0 : index
    %c8_51 = arith.constant 8 : index
    %c0_52 = arith.constant 0 : index
    %53 = vector.load %arg1[%c0_50, %c8_51, %c0_52] : memref<1x24x128xbf16, #tpu.memory_space<vmem>>, vector<1x16x128xbf16>
    %54 = vector.shape_cast %53 : vector<1x16x128xbf16> to vector<16x128xbf16>
    %c0_53 = arith.constant 0 : index
    %c0_54 = arith.constant 0 : index
    %55 = vector.load %arg6[%c0_53, %c0_54] : memref<128x128xbf16, #tpu.memory_space<vmem>>, vector<128x128xbf16>
    %cst_55 = arith.constant dense<0.000000e+00> : vector<16x128xf32>
    %56 = tpu.matmul %54, %55, %cst_55 {dimension_numbers = #tpu.dot_dimension_numbers<[1], [0], [0], [1], [0, 0, 1, 1], [], []>} : vector<16x128xbf16>, vector<128x128xbf16>, vector<16x128xf32> -> vector<16x128xf32>
    %c0_56 = arith.constant 0 : index
    %c0_57 = arith.constant 0 : index
    %57 = vector.load %arg7[%c0_56, %c0_57] : memref<1x128xf32, #tpu.memory_space<vmem>>, vector<1x128xf32>
    %58 = vector.broadcast %57 : vector<1x128xf32> to vector<16x128xf32>
    %59 = arith.addf %56, %58 : vector<16x128xf32>
    %60 = arith.addf %52, %59 : vector<16x128xf32>
    %cst_58 = arith.constant 0.000000e+00 : f32
    %61 = vector.broadcast %cst_58 : f32 to vector<16x128xf32>
    %62 = arith.maximumf %60, %61 : vector<16x128xf32>
    %63 = vector.shape_cast %62 : vector<16x128xf32> to vector<1x16x128xf32>
    %c0_59 = arith.constant 0 : index
    %c0_60 = arith.constant 0 : index
    %c0_61 = arith.constant 0 : index
    %64 = vector.load %arg8[%c0_59, %c0_60, %c0_61] : memref<1x16x128xf32, #tpu.memory_space<vmem>>, vector<1x16x128xf32>
    tpu.vector_store %arg8[%c0_59, %c0_60, %c0_61], %63 {strides = array<i32>} : memref<1x16x128xf32, #tpu.memory_space<vmem>>, vector<1x16x128xf32>,
    return
  }
  func.func @transform_0(%arg0: i32) -> (i32, i32, i32) {
    %c0_i32 = arith.constant 0 : i32
    %c0_i32_0 = arith.constant 0 : i32
    %c0_i32_1 = arith.constant 0 : i32
    return %arg0, %c0_i32, %c0_i32_0 : i32, i32, i32
  }
  func.func @transform_1(%arg0: i32) -> (i32, i32, i32) {
    %c0_i32 = arith.constant 0 : i32
    %c0_i32_0 = arith.constant 0 : i32
    %c0_i32_1 = arith.constant 0 : i32
    %c0_i32_2 = arith.constant 0 : i32
    return %c0_i32, %c0_i32_0, %c0_i32_1 : i32, i32, i32
  }
  func.func @transform_2(%arg0: i32) -> (i32, i32) {
    %c0_i32 = arith.constant 0 : i32
    %c0_i32_0 = arith.constant 0 : i32
    %c0_i32_1 = arith.constant 0 : i32
    return %c0_i32, %c0_i32_0 : i32, i32
  }
  func.func @transform_3(%arg0: i32) -> (i32, i32, i32) {
    %c0_i32 = arith.constant 0 : i32
    %c0_i32_0 = arith.constant 0 : i32
    %c0_i32_1 = arith.constant 0 : i32
    %c0_i32_2 = arith.constant 0 : i32
    return %c0_i32, %c0_i32_0, %c0_i32_1 : i32, i32, i32
  }
  func.func @transform_4(%arg0: i32) -> (i32, i32) {
    %c0_i32 = arith.constant 0 : i32
    %c0_i32_0 = arith.constant 0 : i32
    %c0_i32_1 = arith.constant 0 : i32
    return %c0_i32, %c0_i32_0 : i32, i32
  }
  func.func @transform_5(%arg0: i32) -> (i32, i32) {
    %c0_i32 = arith.constant 0 : i32
    %c0_i32_0 = arith.constant 0 : i32
    %c0_i32_1 = arith.constant 0 : i32
    return %c0_i32, %c0_i32_0 : i32, i32
  }
  func.func @transform_6(%arg0: i32) -> (i32, i32) {
    %c0_i32 = arith.constant 0 : i32
    %c0_i32_0 = arith.constant 0 : i32
    %c0_i32_1 = arith.constant 0 : i32
    return %c0_i32, %c0_i32_0 : i32, i32
  }
  func.func @transform_7(%arg0: i32) -> (i32, i32, i32) {
    %c0_i32 = arith.constant 0 : i32
    %c0_i32_0 = arith.constant 0 : i32
    %c0_i32_1 = arith.constant 0 : i32
    return %arg0, %c0_i32, %c0_i32_0 : i32, i32, i32
  }
}

</mosaic_0001>

<llo_original>
// kernel: tpu_custom_call.1
$region0: #{tpu_custom_call.1}
  #allocation0 [shape = 'u32[]', space=smem, size = 0x4, offset = 0x4, fixed_abs, tag = 'smem constant byte address 0x4 - core index']
  #allocation1 [shape = 'u32[144,128]{1,0:T(1,128)}', space=vmem, size = 0x12000, scoped, tag = 'internal scratch']
  #allocation2 [shape = 'bf16[1,24,128]{2,1,0:T(8,128)(2,1)}', space=vmem, size = 0x1800, scoped, tag = 'scratch operand']
  %s0 = inlined_call_operand.hbm [shape: bf16[2,24,128], index: 0, kind: input, shape index: {}]
  %s1 = inlined_call_operand.hbm [shape: bf16[3,128,128], index: 1, kind: input, shape index: {}]
  %s2 = inlined_call_operand.vmem [shape: f32[1,128], index: 2, kind: input, shape index: {}]
  %s3 = inlined_call_operand.hbm [shape: bf16[3,128,128], index: 3, kind: input, shape index: {}]
  %s4 = inlined_call_operand.vmem [shape: f32[1,128], index: 4, kind: input, shape index: {}]
  %s5 = inlined_call_operand.hbm [shape: bf16[128,128], index: 5, kind: input, shape index: {}]
  %s6 = inlined_call_operand.vmem [shape: f32[1,128], index: 6, kind: input, shape index: {}]
  %s7 = inlined_call_operand.hbm [shape: f32[2,16,128], index: 7, kind: output, shape index: {}]
  %s8 = sld [smem:[#allocation0]]
  $region77: #{tpu_custom_call.1} parent=0
    _
  %s10 = ssub.s32 1, %s8
  %s11 = scalar_select 0, %s10, %s8
  $region1: #{tpu_custom_call.1} parent=0
    #allocation3 [shape = 'u8[12288]{0}', space=vmem, size = 0x3000, scoped, tag = 'input window, operand 0']
    #allocation4 [shape = 's32[2]{0}', space=sflag, size = 0x8, scoped, tag = 'scoped memory for tpu_custom_call.1']
    #allocation5 [shape = 's32[2]{0}', space=sflag, size = 0x8, scoped, tag = 'scoped memory for tpu_custom_call.1']
    #allocation6 [shape = 'u8[98304]{0}', space=vmem, size = 0x18000, scoped, tag = 'input window, operand 1, single buffered']
    #allocation7 [shape = 's32[1]{0}', space=sflag, size = 0x4, scoped, tag = 'scoped memory for tpu_custom_call.1']
    #allocation8 [shape = 'u8[98304]{0}', space=vmem, size = 0x18000, scoped, tag = 'input window, operand 3, single buffered']
    #allocation9 [shape = 'u8[32768]{0}', space=vmem, size = 0x8000, scoped, tag = 'input window, operand 5, single buffered']
    #allocation10 [shape = 's32[1]{0}', space=sflag, size = 0x4, scoped, tag = 'scoped memory for tpu_custom_call.1']
    #allocation11 [shape = 'u8[16384]{0}', space=vmem, size = 0x4000, scoped, tag = 'output window, operand 0']
    %12 = vsyncpa [#allocation4], 0
    %s13 = scalar_lea.sflag [#allocation4], 1
    %14 = vsyncpa %s13, 0
    %15 = vsyncpa [#allocation7], 0
    %16 = vsyncpa [#allocation10], 0
    %17 = vsyncpa [#allocation5], 0
    %s18 = scalar_lea.sflag [#allocation5], 1
    %19 = vsyncpa %s18, 0
    loop: start=0, step=1, limit=4
    $region2: #{tpu_custom_call.1} parent=1 // loop_pre_header
      _
    $region3: #{tpu_custom_call.1} parent=1 // loop_header
      %s21 = sphi 0, %s25
      %p22 = scmp.ge.s32.totalorder %s21, 4
      %s31 = sphi 0, %s33
      %s34 = sphi 0, %s31
      %s35 = sphi 0, %s34
      %s51 = sphi 0, %s35
      %s55 = sphi 0, %s55
      %s57 = sphi 0, %s55
      %s58 = sphi 0, %s57
      %s72 = sphi 0, %s58
      %s76 = sphi 0, %s76
      %s78 = sphi 0, %s76
      %s79 = sphi 0, %s78
      %s93 = sphi 0, %s79
      %s97 = sphi 0, %s97
      %s99 = sphi 0, %s97
      %s100 = sphi 0, %s99
      %s114 = sphi 0, %s100
      %s118 = sphi 0, %s118
      %s120 = sphi 0, %s118
      %s121 = sphi 0, %s120
      %s135 = sphi 0, %s121
      %s139 = sphi 0, %s139
      %s141 = sphi 0, %s139
      %s142 = sphi 0, %s141
      %s156 = sphi 0, %s142
      %s160 = sphi 0, %s160
      %s162 = sphi 0, %s160
      %s163 = sphi 0, %s162
      %s177 = sphi 0, %s163
      %s183 = sphi 0, %s185
      %s186 = sphi 0, %s183
      %s187 = sphi 0, %s186
      %s203 = sphi 0, %s187
    $region4: #{tpu_custom_call.1} parent=1 // loop_header_branch
      %24 = sbr.rel (%p22) target = $region8
    $region5: #{tpu_custom_call.1} parent=1 // loop_body
      %s26 = ssub.s32 %s21, 1
      %s27 = ssub.s32 %s21, 2
      %s28 = sadd.s32 %s21, 1
      %s29 = ssub.s32 %s21, %s28
      %p30 = scmp.eq.s32.totalorder %s29, 0
      %s32 = sadd.s32 %s31, 1
      %s33 = scalar_select %p30, %s31, %s32
      %p36 = pneg %p30
      %p37 = scmp.eq.s32.totalorder %s21, 1
      %p38 = por %p36, %p37
      %p39 = scmp.ne.s32.totalorder %s31, %s34
      %p40 = scmp.eq.s32.totalorder %s21, 0
      %p41 = por %p39, %p40
      %p42 = scmp.ne.s32.totalorder %s31, %s34
      %p43 = scmp.eq.s32.totalorder %s26, 1
      %p44 = por %p42, %p43
      %p45 = scmp.ne.s32.totalorder %s34, %s35
      %p46 = scmp.eq.s32.totalorder %s26, 0
      %p47 = por %p45, %p46
      %p48 = scmp.ne.s32.totalorder %s34, %s35
      %p49 = scmp.eq.s32.totalorder %s27, 1
      %p50 = por %p48, %p49
      %p52 = scmp.ne.s32.totalorder %s35, %s51
      %p53 = scmp.eq.s32.totalorder %s27, 0
      %p54 = por %p52, %p53
      %s56 = sadd.s32 %s55, 1
      %p59 = scmp.eq.s32.totalorder %s21, 1
      %p60 = scmp.ne.s32.totalorder %s55, %s57
      %p61 = scmp.eq.s32.totalorder %s21, 0
      %p62 = por %p60, %p61
      %p63 = scmp.ne.s32.totalorder %s55, %s57
      %p64 = scmp.eq.s32.totalorder %s26, 1
      %p65 = por %p63, %p64
      %p66 = scmp.ne.s32.totalorder %s57, %s58
      %p67 = scmp.eq.s32.totalorder %s26, 0
      %p68 = por %p66, %p67
      %p69 = scmp.ne.s32.totalorder %s57, %s58
      %p70 = scmp.eq.s32.totalorder %s27, 1
      %p71 = por %p69, %p70
      %p73 = scmp.ne.s32.totalorder %s58, %s72
      %p74 = scmp.eq.s32.totalorder %s27, 0
      %p75 = por %p73, %p74
      %s77 = sadd.s32 %s76, 1
      %p80 = scmp.eq.s32.totalorder %s21, 1
      %p81 = scmp.ne.s32.totalorder %s76, %s78
      %p82 = scmp.eq.s32.totalorder %s21, 0
      %p83 = por %p81, %p82
      %p84 = scmp.ne.s32.totalorder %s76, %s78
      %p85 = scmp.eq.s32.totalorder %s26, 1
      %p86 = por %p84, %p85
      %p87 = scmp.ne.s32.totalorder %s78, %s79
      %p88 = scmp.eq.s32.totalorder %s26, 0
      %p89 = por %p87, %p88
      %p90 = scmp.ne.s32.totalorder %s78, %s79
      %p91 = scmp.eq.s32.totalorder %s27, 1
      %p92 = por %p90, %p91
      %p94 = scmp.ne.s32.totalorder %s79, %s93
      %p95 = scmp.eq.s32.totalorder %s27, 0
      %p96 = por %p94, %p95
      %s98 = sadd.s32 %s97, 1
      %p101 = scmp.eq.s32.totalorder %s21, 1
      %p102 = scmp.ne.s32.totalorder %s97, %s99
      %p103 = scmp.eq.s32.totalorder %s21, 0
      %p104 = por %p102, %p103
      %p105 = scmp.ne.s32.totalorder %s97, %s99
      %p106 = scmp.eq.s32.totalorder %s26, 1
      %p107 = por %p105, %p106
      %p108 = scmp.ne.s32.totalorder %s99, %s100
      %p109 = scmp.eq.s32.totalorder %s26, 0
      %p110 = por %p108, %p109
      %p111 = scmp.ne.s32.totalorder %s99, %s100
      %p112 = scmp.eq.s32.totalorder %s27, 1
      %p113 = por %p111, %p112
      %p115 = scmp.ne.s32.totalorder %s100, %s114
      %p116 = scmp.eq.s32.totalorder %s27, 0
      %p117 = por %p115, %p116
      %s119 = sadd.s32 %s118, 1
      %p122 = scmp.eq.s32.totalorder %s21, 1
      %p123 = scmp.ne.s32.totalorder %s118, %s120
      %p124 = scmp.eq.s32.totalorder %s21, 0
      %p125 = por %p123, %p124
      %p126 = scmp.ne.s32.totalorder %s118, %s120
      %p127 = scmp.eq.s32.totalorder %s26, 1
      %p128 = por %p126, %p127
      %p129 = scmp.ne.s32.totalorder %s120, %s121
      %p130 = scmp.eq.s32.totalorder %s26, 0
      %p131 = por %p129, %p130
      %p132 = scmp.ne.s32.totalorder %s120, %s121
      %p133 = scmp.eq.s32.totalorder %s27, 1
      %p134 = por %p132, %p133
      %p136 = scmp.ne.s32.totalorder %s121, %s135
      %p137 = scmp.eq.s32.totalorder %s27, 0
      %p138 = por %p136, %p137
      %s140 = sadd.s32 %s139, 1
      %p143 = scmp.eq.s32.totalorder %s21, 1
      %p144 = scmp.ne.s32.totalorder %s139, %s141
      %p145 = scmp.eq.s32.totalorder %s21, 0
      %p146 = por %p144, %p145
      %p147 = scmp.ne.s32.totalorder %s139, %s141
      %p148 = scmp.eq.s32.totalorder %s26, 1
      %p149 = por %p147, %p148
      %p150 = scmp.ne.s32.totalorder %s141, %s142
      %p151 = scmp.eq.s32.totalorder %s26, 0
      %p152 = por %p150, %p151
      %p153 = scmp.ne.s32.totalorder %s141, %s142
      %p154 = scmp.eq.s32.totalorder %s27, 1
      %p155 = por %p153, %p154
      %p157 = scmp.ne.s32.totalorder %s142, %s156
      %p158 = scmp.eq.s32.totalorder %s27, 0
      %p159 = por %p157, %p158
      %s161 = sadd.s32 %s160, 1
      %p164 = scmp.eq.s32.totalorder %s21, 1
      %p165 = scmp.ne.s32.totalorder %s160, %s162
      %p166 = scmp.eq.s32.totalorder %s21, 0
      %p167 = por %p165, %p166
      %p168 = scmp.ne.s32.totalorder %s160, %s162
      %p169 = scmp.eq.s32.totalorder %s26, 1
      %p170 = por %p168, %p169
      %p171 = scmp.ne.s32.totalorder %s162, %s163
      %p172 = scmp.eq.s32.totalorder %s26, 0
      %p173 = por %p171, %p172
      %p174 = scmp.ne.s32.totalorder %s162, %s163
      %p175 = scmp.eq.s32.totalorder %s27, 1
      %p176 = por %p174, %p175
      %p178 = scmp.ne.s32.totalorder %s163, %s177
      %p179 = scmp.eq.s32.totalorder %s27, 0
      %p180 = por %p178, %p179
      %s181 = ssub.s32 %s21, %s28
      %p182 = scmp.eq.s32.totalorder %s181, 0
      %s184 = sadd.s32 %s183, 1
      %s185 = scalar_select %p182, %s183, %s184
      %p188 = pneg %p182
      %p189 = scmp.eq.s32.totalorder %s21, 1
      %p190 = por %p188, %p189
      %p191 = scmp.ne.s32.totalorder %s183, %s186
      %p192 = scmp.eq.s32.totalorder %s21, 0
      %p193 = por %p191, %p192
      %p194 = scmp.ne.s32.totalorder %s183, %s186
      %p195 = scmp.eq.s32.totalorder %s26, 1
      %p196 = por %p194, %p195
      %p197 = scmp.ne.s32.totalorder %s186, %s187
      %p198 = scmp.eq.s32.totalorder %s26, 0
      %p199 = por %p197, %p198
      %p200 = scmp.ne.s32.totalorder %s186, %s187
      %p201 = scmp.eq.s32.totalorder %s27, 1
      %p202 = por %p200, %p201
      %p204 = scmp.ne.s32.totalorder %s187, %s203
      %p205 = scmp.eq.s32.totalorder %s27, 0
      %p206 = por %p204, %p205
      %p207 = scmp.le.s32.totalorder 1, %s21
      %p208 = scmp.lt.s32.totalorder %s21, 3
      %p209 = pnand %p207, %p208
      %p210 = pneg %p209
      // Predicated region
      $region9: #{tpu_custom_call.1} parent=5 // pred_check
        _
      $region10: #{tpu_custom_call.1} parent=5 // pred_check_branch
        %212 = sbr.rel (%p209) target = $region12
      $region11: #{tpu_custom_call.1} parent=5 // pred_region
        %s213 = ssub.s32 %s21, 1
        // Predicated region
        $region13: #{tpu_custom_call.1} parent=11 // pred_check
          %p214 = pneg %p68
        $region14: #{tpu_custom_call.1} parent=11 // pred_check_branch
          %216 = sbr.rel (%p214) target = $region16
        $region15: #{tpu_custom_call.1} parent=11 // pred_region
          %s218 = ssub.s32 3072, 3072
          %219 = vsyncadd [#allocation7], %s218
          %s220 = sshll.u32 [#allocation6], 4
          %s221 = int_to_ptr.vmem [resolvable:$true] %s220
          %226 = dma.hbm_to_vmem [thread:$0]  %s1, 3072, %s221, [#allocation7], 64, 64, 4
        $region16: #{tpu_custom_call.1} parent=11 // pred_fallthru
          _
        // Predicated region
        $region17: #{tpu_custom_call.1} parent=11 // pred_check
          %p227 = pneg %p89
        $region18: #{tpu_custom_call.1} parent=11 // pred_check_branch
          %229 = sbr.rel (%p227) target = $region20
        $region19: #{tpu_custom_call.1} parent=11 // pred_region
          _
        $region20: #{tpu_custom_call.1} parent=11 // pred_fallthru
          _
        // Predicated region
        $region21: #{tpu_custom_call.1} parent=11 // pred_check
          %p230 = pneg %p110
        $region22: #{tpu_custom_call.1} parent=11 // pred_check_branch
          %232 = sbr.rel (%p230) target = $region24
        $region23: #{tpu_custom_call.1} parent=11 // pred_region
          %s234 = ssub.s32 3072, 3072
          %235 = vsyncadd [#allocation7], %s234
          %s236 = sshll.u32 [#allocation8], 4
          %s237 = int_to_ptr.vmem [resolvable:$true] %s236
          %242 = dma.hbm_to_vmem [thread:$0]  %s3, 3072, %s237, [#allocation7], 64, 64, 4
        $region24: #{tpu_custom_call.1} parent=11 // pred_fallthru
          _
        // Predicated region
        $region25: #{tpu_custom_call.1} parent=11 // pred_check
          %p243 = pneg %p131
        $region26: #{tpu_custom_call.1} parent=11 // pred_check_branch
          %245 = sbr.rel (%p243) target = $region28
        $region27: #{tpu_custom_call.1} parent=11 // pred_region
          _
        $region28: #{tpu_custom_call.1} parent=11 // pred_fallthru
          _
        // Predicated region
        $region29: #{tpu_custom_call.1} parent=11 // pred_check
          %p246 = pneg %p152
        $region30: #{tpu_custom_call.1} parent=11 // pred_check_branch
          %248 = sbr.rel (%p246) target = $region32
        $region31: #{tpu_custom_call.1} parent=11 // pred_region
          %s250 = ssub.s32 1024, 1024
          %251 = vsyncadd [#allocation10], %s250
          %s252 = sshll.u32 [#allocation9], 4
          %s253 = int_to_ptr.vmem [resolvable:$true] %s252
          %258 = dma.hbm_to_vmem [thread:$0]  %s5, 1024, %s253, [#allocation10], 64, 64, 4
        $region32: #{tpu_custom_call.1} parent=11 // pred_fallthru
          _
        // Predicated region
        $region33: #{tpu_custom_call.1} parent=11 // pred_check
          %p259 = pneg %p173
        $region34: #{tpu_custom_call.1} parent=11 // pred_check_branch
          %261 = sbr.rel (%p259) target = $region36
        $region35: #{tpu_custom_call.1} parent=11 // pred_region
          _
        $region36: #{tpu_custom_call.1} parent=11 // pred_fallthru
          _
      $region12: #{tpu_custom_call.1} parent=5 // pred_fallthru
        _
      %p262 = scmp.lt.s32.totalorder %s21, 2
      // Predicated region
      $region37: #{tpu_custom_call.1} parent=5 // pred_check
        %p263 = pneg %p262
      $region38: #{tpu_custom_call.1} parent=5 // pred_check_branch
        %265 = sbr.rel (%p263) target = $region40
      $region39: #{tpu_custom_call.1} parent=5 // pred_region
        // Predicated region
        $region41: #{tpu_custom_call.1} parent=39 // pred_check
          %p266 = pneg %p41
        $region42: #{tpu_custom_call.1} parent=39 // pred_check_branch
          %268 = sbr.rel (%p266) target = $region44
        $region43: #{tpu_custom_call.1} parent=39 // pred_region
          %s269 = sand.u32 %s31, 1
          %s270 = scalar_lea.sflag [#allocation4], %s269
          %s271 = sand.u32 %s31, 1
          %s272 = smul.addr %s271, 12
          %s273 = scalar_lea.vmem [#allocation3], %s272
          %s275 = ssub.s32 192, 192
          %276 = vsyncadd %s270, %s275
          %s277 = smul.addr %s21, 3
          %s278 = smul.addr %s277, 64
          %s279 = scalar_lea.hbm %s0, %s278
          %s280 = sshll.u32 %s273, 4
          %s281 = int_to_ptr.vmem [resolvable:$true] %s280
          %286 = dma.hbm_to_vmem [thread:$0]  %s279, 192, %s281, %s270, 64, 64, 4
        $region44: #{tpu_custom_call.1} parent=39 // pred_fallthru
          _
      $region40: #{tpu_custom_call.1} parent=5 // pred_fallthru
        _
      %p287 = scmp.le.s32.totalorder 1, %s21
      %p288 = scmp.lt.s32.totalorder %s21, 3
      %p289 = pnand %p287, %p288
      %p290 = pneg %p289
      // Predicated region
      $region45: #{tpu_custom_call.1} parent=5 // pred_check
        _
      $region46: #{tpu_custom_call.1} parent=5 // pred_check_branch
        %292 = sbr.rel (%p289) target = $region48
      $region47: #{tpu_custom_call.1} parent=5 // pred_region
        %s293 = ssub.s32 %s21, 1
        %s294 = sand.u32 %s34, 1
        %s295 = scalar_lea.sflag [#allocation4], %s294
        %s296 = sand.u32 %s34, 1
        %s297 = smul.addr %s296, 12
        %s298 = scalar_lea.vmem [#allocation3], %s297
        // Predicated region
        $region49: #{tpu_custom_call.1} parent=47 // pred_check
          %p299 = pneg %p47
        $region50: #{tpu_custom_call.1} parent=47 // pred_check_branch
          %301 = sbr.rel (%p299) target = $region52
        $region51: #{tpu_custom_call.1} parent=47 // pred_region
          %302 = dma.done %s295, 192
        $region52: #{tpu_custom_call.1} parent=47 // pred_fallthru
          _
        // Predicated region
        $region53: #{tpu_custom_call.1} parent=47 // pred_check
          %p303 = pneg %p68
        $region54: #{tpu_custom_call.1} parent=47 // pred_check_branch
          %305 = sbr.rel (%p303) target = $region56
        $region55: #{tpu_custom_call.1} parent=47 // pred_region
          %306 = dma.done [#allocation7], 3072
        $region56: #{tpu_custom_call.1} parent=47 // pred_fallthru
          _
        // Predicated region
        $region57: #{tpu_custom_call.1} parent=47 // pred_check
          %p307 = pneg %p110
        $region58: #{tpu_custom_call.1} parent=47 // pred_check_branch
          %309 = sbr.rel (%p307) target = $region60
        $region59: #{tpu_custom_call.1} parent=47 // pred_region
          %310 = dma.done [#allocation7], 3072
        $region60: #{tpu_custom_call.1} parent=47 // pred_fallthru
          _
        // Predicated region
        $region61: #{tpu_custom_call.1} parent=47 // pred_check
          %p311 = pneg %p152
        $region62: #{tpu_custom_call.1} parent=47 // pred_check_branch
          %313 = sbr.rel (%p311) target = $region64
        $region63: #{tpu_custom_call.1} parent=47 // pred_region
          %314 = dma.done [#allocation10], 1024
        $region64: #{tpu_custom_call.1} parent=47 // pred_fallthru
          _
        %s315 = sand.u32 %s34, 1
        %s316 = scalar_lea.sflag [#allocation4], %s315
        %s317 = sand.u32 %s34, 1
        %s318 = smul.addr %s317, 12
        %s319 = scalar_lea.vmem [#allocation3], %s318
        %p320 = pneg %p47
        %p321 = pneg %p44
        %p322 = pneg %p68
        %p323 = pneg %p65
        %p324 = pneg %p89
        %p325 = pneg %p86
        %p326 = pneg %p110
        %p327 = pneg %p107
        %p328 = pneg %p131
        %p329 = pneg %p128
        %p330 = pneg %p152
        %p331 = pneg %p149
        %p332 = pneg %p173
        %p333 = pneg %p170
        %p334 = pneg %p199
        %p335 = pneg %p196
        %s336 = sand.u32 %s186, 1
        %s337 = scalar_lea.sflag [#allocation5], %s336
        %s338 = sand.u32 %s186, 1
        %s339 = smul.addr %s338, 16
        %s340 = scalar_lea.vmem [#allocation11], %s339
        %v342 = vld [vmem:[%s298] sm:$0xc]
        %v343 = vld [vmem:[%s298 + $0x4] sm:$0xf]
        %v344 = vld [vmem:[%s298 + $0x8] sm:$0x3]
        %v345 = vld [vmem:[#allocation6] sm:$0xf]
        %v346 = vld [vmem:[#allocation6 + $0x4] sm:$0xf]
        %v347 = vld [vmem:[#allocation6 + $0x8] sm:$0xf]
        %v348 = vld [vmem:[#allocation6 + $0xc] sm:$0xf]
        %v349 = vld [vmem:[#allocation6 + $0x10] sm:$0xf]
        %v350 = vld [vmem:[#allocation6 + $0x14] sm:$0xf]
        %v351 = vld [vmem:[#allocation6 + $0x18] sm:$0xf]
        %v352 = vld [vmem:[#allocation6 + $0x1c] sm:$0xf]
        %v353 = vld [vmem:[#allocation6 + $0x20] sm:$0xf]
        %v354 = vld [vmem:[#allocation6 + $0x24] sm:$0xf]
        %v355 = vld [vmem:[#allocation6 + $0x28] sm:$0xf]
        %v356 = vld [vmem:[#allocation6 + $0x2c] sm:$0xf]
        %v357 = vld [vmem:[#allocation6 + $0x30] sm:$0xf]
        %v358 = vld [vmem:[#allocation6 + $0x34] sm:$0xf]
        %v359 = vld [vmem:[#allocation6 + $0x38] sm:$0xf]
        %v360 = vld [vmem:[#allocation6 + $0x3c] sm:$0xf]
        %v361 = vld [vmem:[%s298] sm:$0x8]
        %v362 = vld [vmem:[%s298 + $0x8] sm:$0x7]
        %s363 = scalar_lea.vmem [#allocation6], 64
        %v364 = vld [vmem:[%s363] sm:$0xf]
        %v365 = vld [vmem:[%s363 + $0x4] sm:$0xf]
        %v366 = vld [vmem:[%s363 + $0x8] sm:$0xf]
        %v367 = vld [vmem:[%s363 + $0xc] sm:$0xf]
        %v368 = vld [vmem:[%s363 + $0x10] sm:$0xf]
        %v369 = vld [vmem:[%s363 + $0x14] sm:$0xf]
        %v370 = vld [vmem:[%s363 + $0x18] sm:$0xf]
        %v371 = vld [vmem:[%s363 + $0x1c] sm:$0xf]
        %v372 = vld [vmem:[%s363 + $0x20] sm:$0xf]
        %v373 = vld [vmem:[%s363 + $0x24] sm:$0xf]
        %v374 = vld [vmem:[%s363 + $0x28] sm:$0xf]
        %v375 = vld [vmem:[%s363 + $0x2c] sm:$0xf]
        %v376 = vld [vmem:[%s363 + $0x30] sm:$0xf]
        %v377 = vld [vmem:[%s363 + $0x34] sm:$0xf]
        %v378 = vld [vmem:[%s363 + $0x38] sm:$0xf]
        %v379 = vld [vmem:[%s363 + $0x3c] sm:$0xf]
        %v383 = vunpack.c.l.b16 %v361
        %v384 = vunpack.c.l.b16 %v343
        %v385 = vunpack.c.l.b16 %v362
        %v386 = vpack.c.b16 %v384, %v383
        %v387 = vpack.c.b16 %v385, %v385
        %vm388 = vcmask 1044480
        %v389 = vrot.slane %v386, 3
        %v390 = vrot.slane %v387, 3
        %v391 = vsel %vm388, %v389, %v390
        %v409 = vunpack.c.l.b16 %v364
        %v410 = vunpack.c.l.b16 %v365
        %v411 = vunpack.c.l.b16 %v366
        %v412 = vunpack.c.l.b16 %v367
        %v413 = vunpack.c.l.b16 %v368
        %v414 = vunpack.c.l.b16 %v369
        %v415 = vunpack.c.l.b16 %v370
        %v416 = vunpack.c.l.b16 %v371
        %v417 = vunpack.c.l.b16 %v372
        %v418 = vunpack.c.l.b16 %v373
        %v419 = vunpack.c.l.b16 %v374
        %v420 = vunpack.c.l.b16 %v375
        %v421 = vunpack.c.l.b16 %v376
        %v422 = vunpack.c.l.b16 %v377
        %v423 = vunpack.c.l.b16 %v378
        %v424 = vunpack.c.l.b16 %v379
        %v425 = vpack.c.b16 %v410, %v409
        %v426 = vpack.c.b16 %v412, %v411
        %v427 = vpack.c.b16 %v414, %v413
        %v428 = vpack.c.b16 %v416, %v415
        %v429 = vpack.c.b16 %v418, %v417
        %v430 = vpack.c.b16 %v420, %v419
        %v431 = vpack.c.b16 %v422, %v421
        %v432 = vpack.c.b16 %v424, %v423
        %441 = vmatprep.subr.bf16.mxu0 0
        %442 = vmatpush1.bf16.msra.mxu0 %v425
        %443 = vmatprep.subr.bf16.mxu0 0
        %444 = vmatpush1.bf16.msra.mxu0 %v426
        %445 = vmatprep.subr.bf16.mxu0 0
        %446 = vmatpush1.bf16.msra.mxu0 %v427
        %447 = vmatprep.subr.bf16.mxu0 0
        %448 = vmatpush1.bf16.msra.mxu0 %v428
        %449 = vmatprep.subr.bf16.mxu0 0
        %450 = vmatpush1.bf16.msra.mxu0 %v429
        %451 = vmatprep.subr.bf16.mxu0 0
        %452 = vmatpush1.bf16.msra.mxu0 %v430
        %453 = vmatprep.subr.bf16.mxu0 0
        %454 = vmatpush1.bf16.msra.mxu0 %v431
        %455 = vmatprep.subr.bf16.mxu0 0
        %456 = vmatpush1.bf16.msra.mxu0 %v432
        %457 = vmatprep.subr.bf16.mxu0 0
        %458 = vmatpush1.bf16.msra.mxu0 0
        %459 = vmatprep.subr.bf16.mxu0 0
        %460 = vmatpush1.bf16.msra.mxu0 0
        %461 = vmatprep.subr.bf16.mxu0 0
        %462 = vmatpush1.bf16.msra.mxu0 0
        %463 = vmatprep.subr.bf16.mxu0 0
        %464 = vmatpush1.bf16.msra.mxu0 0
        %465 = vmatprep.subr.bf16.mxu0 0
        %466 = vmatpush1.bf16.msra.mxu0 0
        %467 = vmatprep.subr.bf16.mxu0 0
        %468 = vmatpush1.bf16.msra.mxu0 0
        %469 = vmatprep.subr.bf16.mxu0 0
        %470 = vmatpush1.bf16.msra.mxu0 0
        %471 = vmatprep.subr.bf16.mxu0 0
        %472 = vmatpush1.bf16.msra.mxu0 0
        %473 = vmatprep.mubr.bf16.mxu0 0
        %474 = vmatmul.mubr.bf16.gmra.mrb[0].mxu0 %v391
        %v475 = vpop.f32.mrb[0].mxu0
        %v476 = vadd.f32 0.0, %v475
        %v477 = vpop.f32.mrb[0].mxu0
        %v478 = vpop.f32.mrb[0].mxu0
        %v479 = vadd.f32 0.0, %v478
        %v480 = vpop.f32.mrb[0].mxu0
        %481 = vdwg.mxu0
        %v484 = vunpack.c.l.b16 %v342
        %v485 = vunpack.c.l.b16 %v344
        %v486 = vpack.c.b16 %v384, %v484
        %v487 = vpack.c.b16 %v485, %v485
        %vm488 = vcmask 1045504
        %v489 = vrot.slane %v486, 2
        %v490 = vrot.slane %v487, 2
        %v491 = vsel %vm488, %v489, %v490
        %v509 = vunpack.c.l.b16 %v345
        %v510 = vunpack.c.l.b16 %v346
        %v511 = vunpack.c.l.b16 %v347
        %v512 = vunpack.c.l.b16 %v348
        %v513 = vunpack.c.l.b16 %v349
        %v514 = vunpack.c.l.b16 %v350
        %v515 = vunpack.c.l.b16 %v351
        %v516 = vunpack.c.l.b16 %v352
        %v517 = vunpack.c.l.b16 %v353
        %v518 = vunpack.c.l.b16 %v354
        %v519 = vunpack.c.l.b16 %v355
        %v520 = vunpack.c.l.b16 %v356
        %v521 = vunpack.c.l.b16 %v357
        %v522 = vunpack.c.l.b16 %v358
        %v523 = vunpack.c.l.b16 %v359
        %v524 = vunpack.c.l.b16 %v360
        %v525 = vpack.c.b16 %v510, %v509
        %v526 = vpack.c.b16 %v512, %v511
        %v527 = vpack.c.b16 %v514, %v513
        %v528 = vpack.c.b16 %v516, %v515
        %v529 = vpack.c.b16 %v518, %v517
        %v530 = vpack.c.b16 %v520, %v519
        %v531 = vpack.c.b16 %v522, %v521
        %v532 = vpack.c.b16 %v524, %v523
        %541 = vmatprep.subr.bf16.mxu0 0
        %542 = vmatpush1.bf16.msra.mxu0 %v525
        %543 = vmatprep.subr.bf16.mxu0 0
        %544 = vmatpush1.bf16.msra.mxu0 %v526
        %545 = vmatprep.subr.bf16.mxu0 0
        %546 = vmatpush1.bf16.msra.mxu0 %v527
        %547 = vmatprep.subr.bf16.mxu0 0
        %548 = vmatpush1.bf16.msra.mxu0 %v528
        %549 = vmatprep.subr.bf16.mxu0 0
        %550 = vmatpush1.bf16.msra.mxu0 %v529
        %551 = vmatprep.subr.bf16.mxu0 0
        %552 = vmatpush1.bf16.msra.mxu0 %v530
        %553 = vmatprep.subr.bf16.mxu0 0
        %554 = vmatpush1.bf16.msra.mxu0 %v531
        %555 = vmatprep.subr.bf16.mxu0 0
        %556 = vmatpush1.bf16.msra.mxu0 %v532
        %557 = vmatprep.subr.bf16.mxu0 0
        %558 = vmatpush1.bf16.msra.mxu0 0
        %559 = vmatprep.subr.bf16.mxu0 0
        %560 = vmatpush1.bf16.msra.mxu0 0
        %561 = vmatprep.subr.bf16.mxu0 0
        %562 = vmatpush1.bf16.msra.mxu0 0
        %563 = vmatprep.subr.bf16.mxu0 0
        %564 = vmatpush1.bf16.msra.mxu0 0
        %565 = vmatprep.subr.bf16.mxu0 0
        %566 = vmatpush1.bf16.msra.mxu0 0
        %567 = vmatprep.subr.bf16.mxu0 0
        %568 = vmatpush1.bf16.msra.mxu0 0
        %569 = vmatprep.subr.bf16.mxu0 0
        %570 = vmatpush1.bf16.msra.mxu0 0
        %571 = vmatprep.subr.bf16.mxu0 0
        %572 = vmatpush1.bf16.msra.mxu0 0
        %573 = vmatprep.mubr.bf16.mxu0 0
        %574 = vmatmul.mubr.bf16.gmra.mrb[0].mxu0 %v491
        %v575 = vpop.f32.mrb[0].mxu0
        %v576 = vadd.f32 %v476, %v575
        %v577 = vpop.f32.mrb[0].mxu0
        %v578 = vpop.f32.mrb[0].mxu0
        %v579 = vadd.f32 %v479, %v578
        %v580 = vpop.f32.mrb[0].mxu0
        %581 = vdwg.mxu0
        %v582 = vld [vmem:[%s298 + $0x8] sm:$0xf]
        %s583 = scalar_lea.vmem [#allocation6], 128
        %v584 = vld [vmem:[%s583] sm:$0xf]
        %v585 = vld [vmem:[%s583 + $0x4] sm:$0xf]
        %v586 = vld [vmem:[%s583 + $0x8] sm:$0xf]
        %v587 = vld [vmem:[%s583 + $0xc] sm:$0xf]
        %v588 = vld [vmem:[%s583 + $0x10] sm:$0xf]
        %v589 = vld [vmem:[%s583 + $0x14] sm:$0xf]
        %v590 = vld [vmem:[%s583 + $0x18] sm:$0xf]
        %v591 = vld [vmem:[%s583 + $0x1c] sm:$0xf]
        %v592 = vld [vmem:[%s583 + $0x20] sm:$0xf]
        %v593 = vld [vmem:[%s583 + $0x24] sm:$0xf]
        %v594 = vld [vmem:[%s583 + $0x28] sm:$0xf]
        %v595 = vld [vmem:[%s583 + $0x2c] sm:$0xf]
        %v596 = vld [vmem:[%s583 + $0x30] sm:$0xf]
        %v597 = vld [vmem:[%s583 + $0x34] sm:$0xf]
        %v598 = vld [vmem:[%s583 + $0x38] sm:$0xf]
        %v599 = vld [vmem:[%s583 + $0x3c] sm:$0xf]
        %v601 = vunpack.c.l.b16 %v582
        %v602 = vpack.c.b16 %v601, %v384
        %v620 = vunpack.c.l.b16 %v584
        %v621 = vunpack.c.l.b16 %v585
        %v622 = vunpack.c.l.b16 %v586
        %v623 = vunpack.c.l.b16 %v587
        %v624 = vunpack.c.l.b16 %v588
        %v625 = vunpack.c.l.b16 %v589
        %v626 = vunpack.c.l.b16 %v590
        %v627 = vunpack.c.l.b16 %v591
        %v628 = vunpack.c.l.b16 %v592
        %v629 = vunpack.c.l.b16 %v593
        %v630 = vunpack.c.l.b16 %v594
        %v631 = vunpack.c.l.b16 %v595
        %v632 = vunpack.c.l.b16 %v596
        %v633 = vunpack.c.l.b16 %v597
        %v634 = vunpack.c.l.b16 %v598
        %v635 = vunpack.c.l.b16 %v599
        %v636 = vpack.c.b16 %v621, %v620
        %v637 = vpack.c.b16 %v623, %v622
        %v638 = vpack.c.b16 %v625, %v624
        %v639 = vpack.c.b16 %v627, %v626
        %v640 = vpack.c.b16 %v629, %v628
        %v641 = vpack.c.b16 %v631, %v630
        %v642 = vpack.c.b16 %v633, %v632
        %v643 = vpack.c.b16 %v635, %v634
        %652 = vmatprep.subr.bf16.mxu0 0
        %653 = vmatpush1.bf16.msra.mxu0 %v636
        %654 = vmatprep.subr.bf16.mxu0 0
        %655 = vmatpush1.bf16.msra.mxu0 %v637
        %656 = vmatprep.subr.bf16.mxu0 0
        %657 = vmatpush1.bf16.msra.mxu0 %v638
        %658 = vmatprep.subr.bf16.mxu0 0
        %659 = vmatpush1.bf16.msra.mxu0 %v639
        %660 = vmatprep.subr.bf16.mxu0 0
        %661 = vmatpush1.bf16.msra.mxu0 %v640
        %662 = vmatprep.subr.bf16.mxu0 0
        %663 = vmatpush1.bf16.msra.mxu0 %v641
        %664 = vmatprep.subr.bf16.mxu0 0
        %665 = vmatpush1.bf16.msra.mxu0 %v642
        %666 = vmatprep.subr.bf16.mxu0 0
        %667 = vmatpush1.bf16.msra.mxu0 %v643
        %668 = vmatprep.subr.bf16.mxu0 0
        %669 = vmatpush1.bf16.msra.mxu0 0
        %670 = vmatprep.subr.bf16.mxu0 0
        %671 = vmatpush1.bf16.msra.mxu0 0
        %672 = vmatprep.subr.bf16.mxu0 0
        %673 = vmatpush1.bf16.msra.mxu0 0
        %674 = vmatprep.subr.bf16.mxu0 0
        %675 = vmatpush1.bf16.msra.mxu0 0
        %676 = vmatprep.subr.bf16.mxu0 0
        %677 = vmatpush1.bf16.msra.mxu0 0
        %678 = vmatprep.subr.bf16.mxu0 0
        %679 = vmatpush1.bf16.msra.mxu0 0
        %680 = vmatprep.subr.bf16.mxu0 0
        %681 = vmatpush1.bf16.msra.mxu0 0
        %682 = vmatprep.subr.bf16.mxu0 0
        %683 = vmatpush1.bf16.msra.mxu0 0
        %684 = vmatprep.mubr.bf16.mxu0 0
        %685 = vmatmul.mubr.bf16.gmra.mrb[0].mxu0 %v602
        %v686 = vpop.f32.mrb[0].mxu0
        %v687 = vadd.f32 0.0, %v686
        %v688 = vpop.f32.mrb[0].mxu0
        %v689 = vpop.f32.mrb[0].mxu0
        %v690 = vadd.f32 0.0, %v689
        %v691 = vpop.f32.mrb[0].mxu0
        %692 = vdwg.mxu0
        %v693 = vadd.f32 %v576, %v687
        %v694 = vadd.f32 %v579, %v690
        %v695 = vld [vmem:[%s2] sm:$0x1]
        %v697 = vlaneseq
        %v698 = vshrl.u32 %v697, 7
        %v699 = vsub.s32 0, %v698
        %v700 = vrot.slane %v695, %v699
        %v702 = vadd.f32 %v693, %v700
        %v703 = vadd.f32 %v694, %v700
        %v704 = vmax.f32 %v702, 0.0
        %v705 = vmax.f32 %v703, 0.0
        %706 = vst [vmem:[#allocation2] sm:$0xf] 0
        %v707 = vpack.c.bf16 %v705, %v704
        %v709 = vunpack.c.l.b16 %v707
        %v710 = vunpack.c.h.b16 %v707
        %v711 = vpack.c.b16 %v709, %v709
        %v712 = vpack.c.b16 %v710, %v710
        %715 = vst [vmem:[#allocation2 + $0x4] sm:$0xf] %v711
        %716 = vst [vmem:[#allocation2 + $0x8] sm:$0xf] %v712
        %v717 = vld [vmem:[#allocation2] sm:$0xc]
        %v718 = vld [vmem:[#allocation2 + $0x4] sm:$0xf]
        %v719 = vld [vmem:[#allocation2 + $0x8] sm:$0x3]
        %v720 = vld [vmem:[#allocation8] sm:$0xf]
        %v721 = vld [vmem:[#allocation8 + $0x4] sm:$0xf]
        %v722 = vld [vmem:[#allocation8 + $0x8] sm:$0xf]
        %v723 = vld [vmem:[#allocation8 + $0xc] sm:$0xf]
        %v724 = vld [vmem:[#allocation8 + $0x10] sm:$0xf]
        %v725 = vld [vmem:[#allocation8 + $0x14] sm:$0xf]
        %v726 = vld [vmem:[#allocation8 + $0x18] sm:$0xf]
        %v727 = vld [vmem:[#allocation8 + $0x1c] sm:$0xf]
        %v728 = vld [vmem:[#allocation8 + $0x20] sm:$0xf]
        %v729 = vld [vmem:[#allocation8 + $0x24] sm:$0xf]
        %v730 = vld [vmem:[#allocation8 + $0x28] sm:$0xf]
        %v731 = vld [vmem:[#allocation8 + $0x2c] sm:$0xf]
        %v732 = vld [vmem:[#allocation8 + $0x30] sm:$0xf]
        %v733 = vld [vmem:[#allocation8 + $0x34] sm:$0xf]
        %v734 = vld [vmem:[#allocation8 + $0x38] sm:$0xf]
        %v735 = vld [vmem:[#allocation8 + $0x3c] sm:$0xf]
        %v736 = vld [vmem:[#allocation2] sm:$0x8]
        %v737 = vld [vmem:[#allocation2 + $0x8] sm:$0x7]
        %s738 = scalar_lea.vmem [#allocation8], 64
        %v739 = vld [vmem:[%s738] sm:$0xf]
        %v740 = vld [vmem:[%s738 + $0x4] sm:$0xf]
        %v741 = vld [vmem:[%s738 + $0x8] sm:$0xf]
        %v742 = vld [vmem:[%s738 + $0xc] sm:$0xf]
        %v743 = vld [vmem:[%s738 + $0x10] sm:$0xf]
        %v744 = vld [vmem:[%s738 + $0x14] sm:$0xf]
        %v745 = vld [vmem:[%s738 + $0x18] sm:$0xf]
        %v746 = vld [vmem:[%s738 + $0x1c] sm:$0xf]
        %v747 = vld [vmem:[%s738 + $0x20] sm:$0xf]
        %v748 = vld [vmem:[%s738 + $0x24] sm:$0xf]
        %v749 = vld [vmem:[%s738 + $0x28] sm:$0xf]
        %v750 = vld [vmem:[%s738 + $0x2c] sm:$0xf]
        %v751 = vld [vmem:[%s738 + $0x30] sm:$0xf]
        %v752 = vld [vmem:[%s738 + $0x34] sm:$0xf]
        %v753 = vld [vmem:[%s738 + $0x38] sm:$0xf]
        %v754 = vld [vmem:[%s738 + $0x3c] sm:$0xf]
        %v758 = vunpack.c.l.b16 %v736
        %v759 = vunpack.c.l.b16 %v718
        %v760 = vunpack.c.l.b16 %v737
        %v761 = vpack.c.b16 %v759, %v758
        %v762 = vpack.c.b16 %v760, %v760
        %v763 = vrot.slane %v761, 3
        %v764 = vrot.slane %v762, 3
        %v765 = vsel %vm388, %v763, %v764
        %v783 = vunpack.c.l.b16 %v739
        %v784 = vunpack.c.l.b16 %v740
        %v785 = vunpack.c.l.b16 %v741
        %v786 = vunpack.c.l.b16 %v742
        %v787 = vunpack.c.l.b16 %v743
        %v788 = vunpack.c.l.b16 %v744
        %v789 = vunpack.c.l.b16 %v745
        %v790 = vunpack.c.l.b16 %v746
        %v791 = vunpack.c.l.b16 %v747
        %v792 = vunpack.c.l.b16 %v748
        %v793 = vunpack.c.l.b16 %v749
        %v794 = vunpack.c.l.b16 %v750
        %v795 = vunpack.c.l.b16 %v751
        %v796 = vunpack.c.l.b16 %v752
        %v797 = vunpack.c.l.b16 %v753
        %v798 = vunpack.c.l.b16 %v754
        %v799 = vpack.c.b16 %v784, %v783
        %v800 = vpack.c.b16 %v786, %v785
        %v801 = vpack.c.b16 %v788, %v787
        %v802 = vpack.c.b16 %v790, %v789
        %v803 = vpack.c.b16 %v792, %v791
        %v804 = vpack.c.b16 %v794, %v793
        %v805 = vpack.c.b16 %v796, %v795
        %v806 = vpack.c.b16 %v798, %v797
        %815 = vmatprep.subr.bf16.mxu0 0
        %816 = vmatpush1.bf16.msra.mxu0 %v799
        %817 = vmatprep.subr.bf16.mxu0 0
        %818 = vmatpush1.bf16.msra.mxu0 %v800
        %819 = vmatprep.subr.bf16.mxu0 0
        %820 = vmatpush1.bf16.msra.mxu0 %v801
        %821 = vmatprep.subr.bf16.mxu0 0
        %822 = vmatpush1.bf16.msra.mxu0 %v802
        %823 = vmatprep.subr.bf16.mxu0 0
        %824 = vmatpush1.bf16.msra.mxu0 %v803
        %825 = vmatprep.subr.bf16.mxu0 0
        %826 = vmatpush1.bf16.msra.mxu0 %v804
        %827 = vmatprep.subr.bf16.mxu0 0
        %828 = vmatpush1.bf16.msra.mxu0 %v805
        %829 = vmatprep.subr.bf16.mxu0 0
        %830 = vmatpush1.bf16.msra.mxu0 %v806
        %831 = vmatprep.subr.bf16.mxu0 0
        %832 = vmatpush1.bf16.msra.mxu0 0
        %833 = vmatprep.subr.bf16.mxu0 0
        %834 = vmatpush1.bf16.msra.mxu0 0
        %835 = vmatprep.subr.bf16.mxu0 0
        %836 = vmatpush1.bf16.msra.mxu0 0
        %837 = vmatprep.subr.bf16.mxu0 0
        %838 = vmatpush1.bf16.msra.mxu0 0
        %839 = vmatprep.subr.bf16.mxu0 0
        %840 = vmatpush1.bf16.msra.mxu0 0
        %841 = vmatprep.subr.bf16.mxu0 0
        %842 = vmatpush1.bf16.msra.mxu0 0
        %843 = vmatprep.subr.bf16.mxu0 0
        %844 = vmatpush1.bf16.msra.mxu0 0
        %845 = vmatprep.subr.bf16.mxu0 0
        %846 = vmatpush1.bf16.msra.mxu0 0
        %847 = vmatprep.mubr.bf16.mxu0 0
        %848 = vmatmul.mubr.bf16.gmra.mrb[0].mxu0 %v765
        %v849 = vpop.f32.mrb[0].mxu0
        %v850 = vadd.f32 0.0, %v849
        %v851 = vpop.f32.mrb[0].mxu0
        %v852 = vpop.f32.mrb[0].mxu0
        %v853 = vadd.f32 0.0, %v852
        %v854 = vpop.f32.mrb[0].mxu0
        %855 = vdwg.mxu0
        %v858 = vunpack.c.l.b16 %v717
        %v859 = vunpack.c.l.b16 %v719
        %v860 = vpack.c.b16 %v759, %v858
        %v861 = vpack.c.b16 %v859, %v859
        %v862 = vrot.slane %v860, 2
        %v863 = vrot.slane %v861, 2
        %v864 = vsel %vm488, %v862, %v863
        %v882 = vunpack.c.l.b16 %v720
        %v883 = vunpack.c.l.b16 %v721
        %v884 = vunpack.c.l.b16 %v722
        %v885 = vunpack.c.l.b16 %v723
        %v886 = vunpack.c.l.b16 %v724
        %v887 = vunpack.c.l.b16 %v725
        %v888 = vunpack.c.l.b16 %v726
        %v889 = vunpack.c.l.b16 %v727
        %v890 = vunpack.c.l.b16 %v728
        %v891 = vunpack.c.l.b16 %v729
        %v892 = vunpack.c.l.b16 %v730
        %v893 = vunpack.c.l.b16 %v731
        %v894 = vunpack.c.l.b16 %v732
        %v895 = vunpack.c.l.b16 %v733
        %v896 = vunpack.c.l.b16 %v734
        %v897 = vunpack.c.l.b16 %v735
        %v898 = vpack.c.b16 %v883, %v882
        %v899 = vpack.c.b16 %v885, %v884
        %v900 = vpack.c.b16 %v887, %v886
        %v901 = vpack.c.b16 %v889, %v888
        %v902 = vpack.c.b16 %v891, %v890
        %v903 = vpack.c.b16 %v893, %v892
        %v904 = vpack.c.b16 %v895, %v894
        %v905 = vpack.c.b16 %v897, %v896
        %914 = vmatprep.subr.bf16.mxu0 0
        %915 = vmatpush1.bf16.msra.mxu0 %v898
        %916 = vmatprep.subr.bf16.mxu0 0
        %917 = vmatpush1.bf16.msra.mxu0 %v899
        %918 = vmatprep.subr.bf16.mxu0 0
        %919 = vmatpush1.bf16.msra.mxu0 %v900
        %920 = vmatprep.subr.bf16.mxu0 0
        %921 = vmatpush1.bf16.msra.mxu0 %v901
        %922 = vmatprep.subr.bf16.mxu0 0
        %923 = vmatpush1.bf16.msra.mxu0 %v902
        %924 = vmatprep.subr.bf16.mxu0 0
        %925 = vmatpush1.bf16.msra.mxu0 %v903
        %926 = vmatprep.subr.bf16.mxu0 0
        %927 = vmatpush1.bf16.msra.mxu0 %v904
        %928 = vmatprep.subr.bf16.mxu0 0
        %929 = vmatpush1.bf16.msra.mxu0 %v905
        %930 = vmatprep.subr.bf16.mxu0 0
        %931 = vmatpush1.bf16.msra.mxu0 0
        %932 = vmatprep.subr.bf16.mxu0 0
        %933 = vmatpush1.bf16.msra.mxu0 0
        %934 = vmatprep.subr.bf16.mxu0 0
        %935 = vmatpush1.bf16.msra.mxu0 0
        %936 = vmatprep.subr.bf16.mxu0 0
        %937 = vmatpush1.bf16.msra.mxu0 0
        %938 = vmatprep.subr.bf16.mxu0 0
        %939 = vmatpush1.bf16.msra.mxu0 0
        %940 = vmatprep.subr.bf16.mxu0 0
        %941 = vmatpush1.bf16.msra.mxu0 0
        %942 = vmatprep.subr.bf16.mxu0 0
        %943 = vmatpush1.bf16.msra.mxu0 0
        %944 = vmatprep.subr.bf16.mxu0 0
        %945 = vmatpush1.bf16.msra.mxu0 0
        %946 = vmatprep.mubr.bf16.mxu0 0
        %947 = vmatmul.mubr.bf16.gmra.mrb[0].mxu0 %v864
        %v948 = vpop.f32.mrb[0].mxu0
        %v949 = vadd.f32 %v850, %v948
        %v950 = vpop.f32.mrb[0].mxu0
        %v951 = vpop.f32.mrb[0].mxu0
        %v952 = vadd.f32 %v853, %v951
        %v953 = vpop.f32.mrb[0].mxu0
        %954 = vdwg.mxu0
        %v955 = vld [vmem:[#allocation2 + $0x8] sm:$0xf]
        %s956 = scalar_lea.vmem [#allocation8], 128
        %v957 = vld [vmem:[%s956] sm:$0xf]
        %v958 = vld [vmem:[%s956 + $0x4] sm:$0xf]
        %v959 = vld [vmem:[%s956 + $0x8] sm:$0xf]
        %v960 = vld [vmem:[%s956 + $0xc] sm:$0xf]
        %v961 = vld [vmem:[%s956 + $0x10] sm:$0xf]
        %v962 = vld [vmem:[%s956 + $0x14] sm:$0xf]
        %v963 = vld [vmem:[%s956 + $0x18] sm:$0xf]
        %v964 = vld [vmem:[%s956 + $0x1c] sm:$0xf]
        %v965 = vld [vmem:[%s956 + $0x20] sm:$0xf]
        %v966 = vld [vmem:[%s956 + $0x24] sm:$0xf]
        %v967 = vld [vmem:[%s956 + $0x28] sm:$0xf]
        %v968 = vld [vmem:[%s956 + $0x2c] sm:$0xf]
        %v969 = vld [vmem:[%s956 + $0x30] sm:$0xf]
        %v970 = vld [vmem:[%s956 + $0x34] sm:$0xf]
        %v971 = vld [vmem:[%s956 + $0x38] sm:$0xf]
        %v972 = vld [vmem:[%s956 + $0x3c] sm:$0xf]
        %v974 = vunpack.c.l.b16 %v955
        %v975 = vpack.c.b16 %v974, %v759
        %v993 = vunpack.c.l.b16 %v957
        %v994 = vunpack.c.l.b16 %v958
        %v995 = vunpack.c.l.b16 %v959
        %v996 = vunpack.c.l.b16 %v960
        %v997 = vunpack.c.l.b16 %v961
        %v998 = vunpack.c.l.b16 %v962
        %v999 = vunpack.c.l.b16 %v963
        %v1000 = vunpack.c.l.b16 %v964
        %v1001 = vunpack.c.l.b16 %v965
        %v1002 = vunpack.c.l.b16 %v966
        %v1003 = vunpack.c.l.b16 %v967
        %v1004 = vunpack.c.l.b16 %v968
        %v1005 = vunpack.c.l.b16 %v969
        %v1006 = vunpack.c.l.b16 %v970
        %v1007 = vunpack.c.l.b16 %v971
        %v1008 = vunpack.c.l.b16 %v972
        %v1009 = vpack.c.b16 %v994, %v993
        %v1010 = vpack.c.b16 %v996, %v995
        %v1011 = vpack.c.b16 %v998, %v997
        %v1012 = vpack.c.b16 %v1000, %v999
        %v1013 = vpack.c.b16 %v1002, %v1001
        %v1014 = vpack.c.b16 %v1004, %v1003
        %v1015 = vpack.c.b16 %v1006, %v1005
        %v1016 = vpack.c.b16 %v1008, %v1007
        %1025 = vmatprep.subr.bf16.mxu0 0
        %1026 = vmatpush1.bf16.msra.mxu0 %v1009
        %1027 = vmatprep.subr.bf16.mxu0 0
        %1028 = vmatpush1.bf16.msra.mxu0 %v1010
        %1029 = vmatprep.subr.bf16.mxu0 0
        %1030 = vmatpush1.bf16.msra.mxu0 %v1011
        %1031 = vmatprep.subr.bf16.mxu0 0
        %1032 = vmatpush1.bf16.msra.mxu0 %v1012
        %1033 = vmatprep.subr.bf16.mxu0 0
        %1034 = vmatpush1.bf16.msra.mxu0 %v1013
        %1035 = vmatprep.subr.bf16.mxu0 0
        %1036 = vmatpush1.bf16.msra.mxu0 %v1014
        %1037 = vmatprep.subr.bf16.mxu0 0
        %1038 = vmatpush1.bf16.msra.mxu0 %v1015
        %1039 = vmatprep.subr.bf16.mxu0 0
        %1040 = vmatpush1.bf16.msra.mxu0 %v1016
        %1041 = vmatprep.subr.bf16.mxu0 0
        %1042 = vmatpush1.bf16.msra.mxu0 0
        %1043 = vmatprep.subr.bf16.mxu0 0
        %1044 = vmatpush1.bf16.msra.mxu0 0
        %1045 = vmatprep.subr.bf16.mxu0 0
        %1046 = vmatpush1.bf16.msra.mxu0 0
        %1047 = vmatprep.subr.bf16.mxu0 0
        %1048 = vmatpush1.bf16.msra.mxu0 0
        %1049 = vmatprep.subr.bf16.mxu0 0
        %1050 = vmatpush1.bf16.msra.mxu0 0
        %1051 = vmatprep.subr.bf16.mxu0 0
        %1052 = vmatpush1.bf16.msra.mxu0 0
        %1053 = vmatprep.subr.bf16.mxu0 0
        %1054 = vmatpush1.bf16.msra.mxu0 0
        %1055 = vmatprep.subr.bf16.mxu0 0
        %1056 = vmatpush1.bf16.msra.mxu0 0
        %1057 = vmatprep.mubr.bf16.mxu0 0
        %1058 = vmatmul.mubr.bf16.gmra.mrb[0].mxu0 %v975
        %v1059 = vpop.f32.mrb[0].mxu0
        %v1060 = vadd.f32 0.0, %v1059
        %v1061 = vpop.f32.mrb[0].mxu0
        %v1062 = vpop.f32.mrb[0].mxu0
        %v1063 = vadd.f32 0.0, %v1062
        %v1064 = vpop.f32.mrb[0].mxu0
        %1065 = vdwg.mxu0
        %v1066 = vadd.f32 %v949, %v1060
        %v1067 = vadd.f32 %v952, %v1063
        %v1068 = vld [vmem:[%s4] sm:$0x1]
        %v1070 = vlaneseq
        %v1071 = vshrl.u32 %v1070, 7
        %v1072 = vsub.s32 0, %v1071
        %v1073 = vrot.slane %v1068, %v1072
        %v1075 = vadd.f32 %v1066, %v1073
        %v1076 = vadd.f32 %v1067, %v1073
        %v1077 = vmax.f32 %v1075, 0.0
        %v1078 = vmax.f32 %v1076, 0.0
        %v1079 = vld [vmem:[%s298 + $0x4] sm:$0xf]
        %v1080 = vld [vmem:[%s298 + $0x8] sm:$0xf]
        %v1081 = vld [vmem:[#allocation9] sm:$0xf]
        %v1082 = vld [vmem:[#allocation9 + $0x4] sm:$0xf]
        %v1083 = vld [vmem:[#allocation9 + $0x8] sm:$0xf]
        %v1084 = vld [vmem:[#allocation9 + $0xc] sm:$0xf]
        %v1085 = vld [vmem:[#allocation9 + $0x10] sm:$0xf]
        %v1086 = vld [vmem:[#allocation9 + $0x14] sm:$0xf]
        %v1087 = vld [vmem:[#allocation9 + $0x18] sm:$0xf]
        %v1088 = vld [vmem:[#allocation9 + $0x1c] sm:$0xf]
        %v1089 = vld [vmem:[#allocation9 + $0x20] sm:$0xf]
        %v1090 = vld [vmem:[#allocation9 + $0x24] sm:$0xf]
        %v1091 = vld [vmem:[#allocation9 + $0x28] sm:$0xf]
        %v1092 = vld [vmem:[#allocation9 + $0x2c] sm:$0xf]
        %v1093 = vld [vmem:[#allocation9 + $0x30] sm:$0xf]
        %v1094 = vld [vmem:[#allocation9 + $0x34] sm:$0xf]
        %v1095 = vld [vmem:[#allocation9 + $0x38] sm:$0xf]
        %v1096 = vld [vmem:[#allocation9 + $0x3c] sm:$0xf]
        %v1097 = vld [vmem:[%s6] sm:$0x1]
        %v1099 = vlaneseq
        %v1100 = vshrl.u32 %v1099, 7
        %v1101 = vsub.s32 0, %v1100
        %v1102 = vrot.slane %v1097, %v1101
        %v1106 = vunpack.c.l.b16 %v1079
        %v1107 = vunpack.c.l.b16 %v1080
        %v1108 = vpack.c.b16 %v1107, %v1106
        %v1126 = vunpack.c.l.b16 %v1081
        %v1127 = vunpack.c.l.b16 %v1082
        %v1128 = vunpack.c.l.b16 %v1083
        %v1129 = vunpack.c.l.b16 %v1084
        %v1130 = vunpack.c.l.b16 %v1085
        %v1131 = vunpack.c.l.b16 %v1086
        %v1132 = vunpack.c.l.b16 %v1087
        %v1133 = vunpack.c.l.b16 %v1088
        %v1134 = vunpack.c.l.b16 %v1089
        %v1135 = vunpack.c.l.b16 %v1090
        %v1136 = vunpack.c.l.b16 %v1091
        %v1137 = vunpack.c.l.b16 %v1092
        %v1138 = vunpack.c.l.b16 %v1093
        %v1139 = vunpack.c.l.b16 %v1094
        %v1140 = vunpack.c.l.b16 %v1095
        %v1141 = vunpack.c.l.b16 %v1096
        %v1142 = vpack.c.b16 %v1127, %v1126
        %v1143 = vpack.c.b16 %v1129, %v1128
        %v1144 = vpack.c.b16 %v1131, %v1130
        %v1145 = vpack.c.b16 %v1133, %v1132
        %v1146 = vpack.c.b16 %v1135, %v1134
        %v1147 = vpack.c.b16 %v1137, %v1136
        %v1148 = vpack.c.b16 %v1139, %v1138
        %v1149 = vpack.c.b16 %v1141, %v1140
        %1158 = vmatprep.subr.bf16.mxu0 0
        %1159 = vmatpush1.bf16.msra.mxu0 %v1142
        %1160 = vmatprep.subr.bf16.mxu0 0
        %1161 = vmatpush1.bf16.msra.mxu0 %v1143
        %1162 = vmatprep.subr.bf16.mxu0 0
        %1163 = vmatpush1.bf16.msra.mxu0 %v1144
        %1164 = vmatprep.subr.bf16.mxu0 0
        %1165 = vmatpush1.bf16.msra.mxu0 %v1145
        %1166 = vmatprep.subr.bf16.mxu0 0
        %1167 = vmatpush1.bf16.msra.mxu0 %v1146
        %1168 = vmatprep.subr.bf16.mxu0 0
        %1169 = vmatpush1.bf16.msra.mxu0 %v1147
        %1170 = vmatprep.subr.bf16.mxu0 0
        %1171 = vmatpush1.bf16.msra.mxu0 %v1148
        %1172 = vmatprep.subr.bf16.mxu0 0
        %1173 = vmatpush1.bf16.msra.mxu0 %v1149
        %1174 = vmatprep.subr.bf16.mxu0 0
        %1175 = vmatpush1.bf16.msra.mxu0 0
        %1176 = vmatprep.subr.bf16.mxu0 0
        %1177 = vmatpush1.bf16.msra.mxu0 0
        %1178 = vmatprep.subr.bf16.mxu0 0
        %1179 = vmatpush1.bf16.msra.mxu0 0
        %1180 = vmatprep.subr.bf16.mxu0 0
        %1181 = vmatpush1.bf16.msra.mxu0 0
        %1182 = vmatprep.subr.bf16.mxu0 0
        %1183 = vmatpush1.bf16.msra.mxu0 0
        %1184 = vmatprep.subr.bf16.mxu0 0
        %1185 = vmatpush1.bf16.msra.mxu0 0
        %1186 = vmatprep.subr.bf16.mxu0 0
        %1187 = vmatpush1.bf16.msra.mxu0 0
        %1188 = vmatprep.subr.bf16.mxu0 0
        %1189 = vmatpush1.bf16.msra.mxu0 0
        %1190 = vmatprep.mubr.bf16.mxu0 0
        %1191 = vmatmul.mubr.bf16.gmra.mrb[0].mxu0 %v1108
        %v1192 = vpop.f32.mrb[0].mxu0
        %v1193 = vadd.f32 %v1102, %v1192
        %v1194 = vpop.f32.mrb[0].mxu0
        %v1195 = vpop.f32.mrb[0].mxu0
        %v1196 = vadd.f32 %v1102, %v1195
        %v1197 = vpop.f32.mrb[0].mxu0
        %1198 = vdwg.mxu0
        %v1199 = vadd.f32 %v1077, %v1193
        %v1200 = vadd.f32 %v1078, %v1196
        %v1201 = vmax.f32 %v1199, 0.0
        %v1202 = vmax.f32 %v1200, 0.0
        %1203 = vst [vmem:[%s340] sm:$0xff] %v1201
        %1204 = vst [vmem:[%s340 + $0x8] sm:$0xff] %v1202
        %s1205 = sand.u32 %s186, 1
        %s1206 = scalar_lea.sflag [#allocation5], %s1205
        %s1207 = sand.u32 %s186, 1
        %s1208 = smul.addr %s1207, 16
        %s1209 = scalar_lea.vmem [#allocation11], %s1208
        // Predicated region
        $region65: #{tpu_custom_call.1} parent=47 // pred_check
          %p1210 = pneg %p196
        $region66: #{tpu_custom_call.1} parent=47 // pred_check_branch
          %1212 = sbr.rel (%p1210) target = $region68
        $region67: #{tpu_custom_call.1} parent=47 // pred_region
          %s1214 = ssub.s32 256, 256
          %1215 = vsyncadd %s1206, %s1214
          %s1216 = smul.addr %s26, 2
          %s1217 = smul.addr %s1216, 128
          %s1218 = scalar_lea.hbm %s7, %s1217
          %s1219 = sshll.u32 %s1209, 4
          %s1220 = int_to_ptr.vmem [resolvable:$true] %s1219
          %1225 = dma.vmem_to_hbm [thread:$0]  %s1220, 256, %s1218, %s1206, 128, 128, 8
        $region68: #{tpu_custom_call.1} parent=47 // pred_fallthru
          _
      $region48: #{tpu_custom_call.1} parent=5 // pred_fallthru
        _
      %p1226 = scmp.le.s32.totalorder 2, %s21
      // Predicated region
      $region69: #{tpu_custom_call.1} parent=5 // pred_check
        %p1227 = pneg %p1226
      $region70: #{tpu_custom_call.1} parent=5 // pred_check_branch
        %1229 = sbr.rel (%p1227) target = $region72
      $region71: #{tpu_custom_call.1} parent=5 // pred_region
        %s1230 = ssub.s32 %s21, 2
        // Predicated region
        $region73: #{tpu_custom_call.1} parent=71 // pred_check
          %p1231 = pneg %p202
        $region74: #{tpu_custom_call.1} parent=71 // pred_check_branch
          %1233 = sbr.rel (%p1231) target = $region76
        $region75: #{tpu_custom_call.1} parent=71 // pred_region
          %s1234 = sand.u32 %s187, 1
          %s1235 = scalar_lea.sflag [#allocation5], %s1234
          %s1236 = sand.u32 %s187, 1
          %s1237 = smul.addr %s1236, 16
          %s1238 = scalar_lea.vmem [#allocation11], %s1237
          %1239 = dma.done %s1235, 256
        $region76: #{tpu_custom_call.1} parent=71 // pred_fallthru
          _
      $region72: #{tpu_custom_call.1} parent=5 // pred_fallthru
        _
    $region6: #{tpu_custom_call.1} parent=1 // loop_footer
      %s25 = sadd.s32 1, %s21
    $region7: #{tpu_custom_call.1} parent=1 // loop_footer_branch
      %20 = sbr.rel target = $region3
    $region8: #{tpu_custom_call.1} parent=1 // loop_exit
      _
    %1240 = vsyncpa [#allocation4], 1
    %s1241 = scalar_lea.sflag [#allocation4], 1
    %1242 = vsyncpa %s1241, 1
    %1243 = vsyncpa [#allocation7], 1
    %1244 = vsyncpa [#allocation10], 1
    %1245 = vsyncpa [#allocation5], 1
    %s1246 = scalar_lea.sflag [#allocation5], 1
    %1247 = vsyncpa %s1246, 1

</llo_original>
